<compile_context>
chip_gen: v5e
topology: v5e:2x2
jax: 0.10.0
libtpu: 0.0.40
codegen_flags: <defaults>
</compile_context>

<pallas_src>
import functools

import jax
import jax.numpy as jnp
import numpy as np
from jax import lax
from jax.experimental import pallas as pl
from jax.experimental.pallas import tpu as pltpu


def _round_up(x, m):
    return ((x + m - 1) // m) * m


def _cdiv(a, b):
    return -(-a // b)


def neural_iid_kernel(emb_ref, obs_ref, mask_ref, w_ref, b_ref, cprior_ref,
                      log_emiss_ref, marg_ref, *, emiss_weight):
    """One lane-dense token tile (tokens on the 128-lane axis).

    emb_ref       : (TN, D)          embeddings, natural token-major layout
    obs_ref       : (O, S, 1, TN)    observation probabilities
    mask_ref      : (1, TN)          sequence-length mask (0/1)
    w_ref         : (C, D)           fused weights / T, C = O*S*H + H
    b_ref         : (C, 1)           fused biases / T
    cprior_ref    : (O, 1, H, 1)     (1 - emiss_weight) * softmax(unnorm / T)
    log_emiss_ref : (O, S, H, TN)    output: log emission matrix (bf16)
    marg_ref      : (1, TN)          output: masked per-token marginal log-lik
    """
    n_obs, n_src = obs_ref.shape[0], obs_ref.shape[1]
    n_hidden = cprior_ref.shape[2]
    tn = emb_ref.shape[0]
    c_em = n_obs * n_src * n_hidden

    # --- single fused MXU matmul: (C, D) x (TN, D)^T -> (C, TN) (NT form) ---
    fused = lax.dot_general(
        w_ref[...], emb_ref[...],
        dimension_numbers=(((1,), (1,)), ((), ())),
        preferred_element_type=jnp.float32)
    fused = fused + b_ref[...]                                    # (C, TN)

    # --- hidden branch: log_softmax over H on a dense (H, TN) slab ----------
    hid = fused[c_em:c_em + n_hidden, :]                          # (H, TN)
    m_h = jnp.max(hid, axis=0, keepdims=True)
    z_h = hid - m_h
    log_hidden = z_h - jnp.log(jnp.sum(jnp.exp(z_h), axis=0, keepdims=True))

    # --- emission branch: softmax over n_obs (leading axis -> VPU reduce) ---
    em_logits = fused[:c_em, :].reshape(n_obs, n_src, n_hidden, tn)
    m_e = jnp.max(em_logits, axis=0, keepdims=True)               # (1,S,H,TN)
    e_e = jnp.exp(em_logits - m_e)                                # EUP pass 1
    denom = jnp.sum(e_e, axis=0, keepdims=True)                   # (1,S,H,TN)
    scale = emiss_weight * pl.reciprocal(denom, approx=True)      # (1,S,H,TN)
    mix = cprior_ref[...] + e_e * scale                           # (O,S,H,TN)

    # dominant output stream: log emission matrix, stored bf16, lane-dense
    log_emiss_ref[...] = jnp.log(mix).astype(log_emiss_ref.dtype)  # EUP pass 2

    # --- log_emiss_probs = sum_src log( sum_obs mix * obs ) -----------------
    # logsumexp_obs(log(mix) + log(obs)) == log(sum_obs mix * obs): no extra
    # exp/log passes, and all-zero obs rows give -inf (matches the reference).
    s = jnp.sum(mix * obs_ref[...], axis=0)                       # (S, H, TN)
    acc = jnp.sum(jnp.log(s), axis=0)                             # (H, TN)

    # --- marginal = logsumexp_H(log(hidden) + log_emiss_probs) --------------
    y = log_hidden + acc                                          # (H, TN)
    m_y = jnp.max(y, axis=0, keepdims=True)                       # (1, TN)
    marginal = jnp.log(jnp.sum(jnp.exp(y - m_y), axis=0, keepdims=True)) + m_y

    # masked per-token partials; the wrapper finishes the (tiny) reduction
    marg_ref[...] = marginal * mask_ref[...]


def _normalize_observation(obs, n_obs):
    # mirrors NeuralIID._initialize_states(normalize_observation=True) (glue)
    lbs = jnp.argmax(obs, axis=-1)                                # (B, L, S)
    entity_idx = jnp.sum(lbs, axis=-1) != 0                       # (B, L)
    no_entity_idx = lbs == 0                                      # (B, L, S)
    no_obs_src_idx = entity_idx[..., None] & no_entity_idx
    substitute = jnp.concatenate(
        [jnp.array([0.01], jnp.float32),
         jnp.full((n_obs - 1,), 0.99 / n_obs, jnp.float32)])
    return jnp.where(no_obs_src_idx[..., None], substitute, obs)


def neural_iid_forward(emb, obs, seq_lengths, params, *, emiss_weight,
                       temperature=1.0, normalize_observation=True,
                       block_tokens=2048, log_emiss_dtype=jnp.bfloat16):
    B, L, D = emb.shape
    _, _, n_src, n_obs = obs.shape
    n_hidden = params["unnormalized_emiss"].shape[0]
    N = B * L
    c_em = n_obs * n_src * n_hidden
    C = c_em + n_hidden                     # hidden rows appended, no padding

    if normalize_observation:
        obs = _normalize_observation(obs, n_obs)

    # ---- token-axis tiling: lane-dense tiles, multiples of 128 --------------
    block_tokens = max(128, _round_up(int(block_tokens), 128))
    n_base = _round_up(N, 128)
    num_tiles = max(1, _cdiv(n_base, block_tokens))
    if num_tiles == 1 and n_base >= 256:
        num_tiles = 2        # let the "parallel" grid axis shard across 2 TCs
    tn = _round_up(_cdiv(n_base, num_tiles), 128)
    n_pad = tn * num_tiles

    # ---- layout glue (small; fused by XLA) -----------------------------------
    emb_p = jnp.pad(emb.reshape(N, D).astype(jnp.float32),
                    ((0, n_pad - N), (0, 0)))                     # (Npad, D)
    obs_t = jnp.transpose(obs.reshape(N, n_src, n_obs).astype(jnp.float32),
                          (2, 1, 0))                              # (O, S, N)
    obs_t = jnp.pad(obs_t, ((0, 0), (0, 0), (0, n_pad - N)),
                    constant_values=1.0)                          # pad > 0
    obs_t = obs_t.reshape(n_obs, n_src, 1, n_pad)
    mask = (jnp.arange(L)[None, :] < seq_lengths[:, None]).astype(jnp.float32)
    mask = jnp.pad(mask.reshape(1, N), ((0, 0), (0, n_pad - N)))

    # ---- fuse all linear layers into one (C, D) weight; fold 1/temperature --
    inv_t = 1.0 / float(temperature)
    w_em = jnp.transpose(params["w_emiss"], (3, 0, 1, 2)).reshape(c_em, D)
    b_em = jnp.transpose(params["b_emiss"][:, :, 0, :],
                         (2, 0, 1)).reshape(c_em, 1)
    w_h = jnp.transpose(params["w_hidden"])                       # (H, D)
    b_h = params["b_hidden"].reshape(n_hidden, 1)
    w_fused = (inv_t * jnp.concatenate([w_em, w_h], axis=0)
               ).astype(jnp.float32)                              # (C, D)
    b_fused = (inv_t * jnp.concatenate([b_em, b_h], axis=0)
               ).astype(jnp.float32)                              # (C, 1)

    # grid-invariant emission prior, pre-mixed with (1 - emiss_weight)
    c_prior = ((1.0 - emiss_weight)
               * jax.nn.softmax(params["unnormalized_emiss"] * inv_t, axis=-1))
    c_prior = jnp.transpose(c_prior).reshape(
        n_obs, 1, n_hidden, 1).astype(jnp.float32)

    kernel = functools.partial(neural_iid_kernel,
                               emiss_weight=float(emiss_weight))

    grid_spec = pltpu.PrefetchScalarGridSpec(
        num_scalar_prefetch=0,
        grid=(num_tiles,),
        in_specs=[
            pl.BlockSpec((tn, D), lambda i: (i, 0)),                      # emb
            pl.BlockSpec((n_obs, n_src, 1, tn), lambda i: (0, 0, 0, i)),  # obs
            pl.BlockSpec((1, tn), lambda i: (0, i)),                      # mask
            pl.BlockSpec((C, D), lambda i: (0, 0)),                       # W
            pl.BlockSpec((C, 1), lambda i: (0, 0)),                       # b
            pl.BlockSpec((n_obs, 1, n_hidden, 1), lambda i: (0, 0, 0, 0)),
        ],
        out_specs=(
            pl.BlockSpec((n_obs, n_src, n_hidden, tn),
                         lambda i: (0, 0, 0, i)),                        # log_e
            pl.BlockSpec((1, tn), lambda i: (0, i)),                     # marg
        ),
    )
    out_shape = (
        jax.ShapeDtypeStruct((n_obs, n_src, n_hidden, n_pad), log_emiss_dtype),
        jax.ShapeDtypeStruct((1, n_pad), jnp.float32),
    )
    log_emiss_t, marg = pl.pallas_call(
        kernel,
        grid_spec=grid_spec,
        out_shape=out_shape,
        compiler_params=pltpu.CompilerParams(
            dimension_semantics=("parallel",),
            vmem_limit_bytes=40 * 1024 * 1024),   # fits v7x's 64 MiB/TC VMEM
    )(emb_p, obs_t, mask, w_fused, b_fused, c_prior)

    # ---- tiny host-side reductions / layout plumbing -------------------------
    ll = jnp.sum(marg) / B              # padded lanes were written as zeros
    # TODO(synk): downstream consumers should read the kernel-native
    # (O, S, H, N) bf16 layout directly; this transpose only exists to match
    # the (B, L, S, H, O) shape returned by the PyTorch module.
    log_emiss = jnp.transpose(log_emiss_t[:, :, :, :N], (3, 1, 2, 0))
    log_emiss = log_emiss.reshape(B, L, n_src, n_hidden, n_obs)
    return ll, log_emiss


def neural_iid_reference(emb, obs, seq_lengths, params, *, emiss_weight,
                         temperature=1.0, normalize_observation=True):
    """Pure-JAX reference replicating the PyTorch forward."""
    B, L, _ = emb.shape
    _, _, n_src, n_obs = obs.shape
    if normalize_observation:
        obs = _normalize_observation(obs, n_obs)
    with jax.default_matmul_precision("highest"):
        hidden = jax.nn.softmax(
            (emb @ params["w_hidden"] + params["b_hidden"]) / temperature, -1)
        prior = jax.nn.softmax(params["unnormalized_emiss"] / temperature, -1)
        logits = (jnp.einsum("bld,shdo->blsho", emb, params["w_emiss"])
                  + params["b_emiss"][:, :, 0, :]) / temperature
    nn_emiss = jax.nn.softmax(logits, axis=-1)
    log_emiss = jnp.log((1.0 - emiss_weight) * prior + emiss_weight * nn_emiss)
    log_obs = jnp.log(obs)                                          # (B,L,S,O)
    log_emiss_probs = jax.scipy.special.logsumexp(
        log_emiss + log_obs[..., None, :], axis=-1).sum(axis=-2)    # (B,L,H)
    marginal = jax.scipy.special.logsumexp(
        jnp.log(hidden) + log_emiss_probs, axis=-1)                 # (B,L)
    mask = (jnp.arange(L)[None, :] < seq_lengths[:, None]).astype(jnp.float32)
    ll = jnp.mean(jnp.sum(marginal * mask, axis=-1))
    return ll, log_emiss


if __name__ == "__main__":
    # small shapes consistent with the module's forward
    B, L, D = 2, 8, 32            # batch, max_seq_length, d_emb
    n_hidden, n_obs, n_src = 8, 8, 3
    emiss_weight = 0.7            # args.emiss_nn_weight
    # (args.trans_nn_weight is unused by the IID forward path)

    key = jax.random.PRNGKey(0)
    k_emb, k_obs, k_wh, k_bh, k_we, k_be = jax.random.split(key, 6)

    emb = jax.random.normal(k_emb, (B, L, D), jnp.float32)
    obs = jax.nn.softmax(
        3.0 * jax.random.normal(k_obs, (B, L, n_src, n_obs)), axis=-1
    ).astype(jnp.float32)
    seq_lengths = jnp.array([L, L - 3], dtype=jnp.int32)

    # deterministic synthetic parameter init (shapes mirror the torch module)
    gain = float(np.sqrt(2.0))                                   # gain('relu')
    bound = gain * float(np.sqrt(6.0 / (D + n_hidden * n_obs)))  # xavier_uniform
    params = {
        "w_hidden": 0.1 * jax.random.normal(k_wh, (D, n_hidden), jnp.float32),
        "b_hidden": 0.01 * jax.random.normal(k_bh, (1, n_hidden), jnp.float32),
        # nn.Linear(d_emb, n_hidden*n_obs) weights, reorganized per (src, h)
        "w_emiss": jax.random.uniform(k_we, (n_src, n_hidden, D, n_obs),
                                      jnp.float32, -bound, bound),
        "b_emiss": 0.01 * jax.random.normal(k_be, (n_src, n_hidden, 1, n_obs),
                                            jnp.float32),
        # emiss_matrix=None -> zeros(n_hidden, n_obs)
        "unnormalized_emiss": jnp.zeros((n_hidden, n_obs), jnp.float32),
    }

    ll, log_emiss = neural_iid_forward(
        emb, obs, seq_lengths, params,
        emiss_weight=emiss_weight, normalize_observation=True)
    jax.block_until_ready((ll, log_emiss))

    ll_ref, log_emiss_ref = neural_iid_reference(
        emb, obs, seq_lengths, params,
        emiss_weight=emiss_weight, normalize_observation=True)
    np.testing.assert_allclose(np.asarray(ll).astype(np.float32),
                               np.asarray(ll_ref).astype(np.float32),
                               rtol=1e-2, atol=1e-2)
    np.testing.assert_allclose(np.asarray(log_emiss).astype(np.float32),
                               np.asarray(log_emiss_ref).astype(np.float32),
                               rtol=1e-2, atol=1e-2)

    print("KERNEL_OK")
</pallas_src>

<mosaic_0001>
module attributes {stable_mosaic.version = 11 : i64} {
  func.func @neural_iid_kernel(%arg0: i32, %arg1: memref<128x32xf32, #tpu.memory_space<vmem>>, %arg2: memref<8x3x1x128xf32, #tpu.memory_space<vmem>>, %arg3: memref<1x128xf32, #tpu.memory_space<vmem>>, %arg4: memref<200x32xf32, #tpu.memory_space<vmem>>, %arg5: memref<200x1xf32, #tpu.memory_space<vmem>>, %arg6: memref<8x1x8x1xf32, #tpu.memory_space<vmem>>, %arg7: memref<8x3x8x128xbf16, #tpu.memory_space<vmem>>, %arg8: memref<1x128xf32, #tpu.memory_space<vmem>>) attributes {dimension_semantics = [#tpu.dimension_semantics<parallel>], iteration_bounds = array<i64: 1>, scalar_prefetch = 0 : i64, scratch_operands = 0 : i64, tpu.core_type = #tpu.core_type<tc>, window_params = [{transform_indices = @transform_0, window_bounds = array<i64: 128, 32>}, {transform_indices = @transform_1, window_bounds = array<i64: 8, 3, 1, 128>}, {transform_indices = @transform_2, window_bounds = array<i64: 1, 128>}, {pipeline_mode = #tpu.pipeline_mode<synchronous>, transform_indices = @transform_3, window_bounds = array<i64: 200, 32>}, {pipeline_mode = #tpu.pipeline_mode<synchronous>, transform_indices = @transform_4, window_bounds = array<i64: 200, 1>}, {pipeline_mode = #tpu.pipeline_mode<synchronous>, transform_indices = @transform_5, window_bounds = array<i64: 8, 1, 8, 1>}, {transform_indices = @transform_6, window_bounds = array<i64: 8, 3, 8, 128>}, {transform_indices = @transform_7, window_bounds = array<i64: 1, 128>}]} {
    %c0 = arith.constant 0 : index
    %c0_0 = arith.constant 0 : index
    %0 = vector.load %arg4[%c0, %c0_0] : memref<200x32xf32, #tpu.memory_space<vmem>>, vector<200x32xf32>
    %c0_1 = arith.constant 0 : index
    %c0_2 = arith.constant 0 : index
    %1 = vector.load %arg1[%c0_1, %c0_2] : memref<128x32xf32, #tpu.memory_space<vmem>>, vector<128x32xf32>
    %cst = arith.constant dense<0.000000e+00> : vector<200x128xf32>
    %2 = tpu.matmul %0, %1, %cst {dimension_numbers = #tpu.dot_dimension_numbers<[1], [1], [0], [0], [0, 0, 1, 0], [], []>} : vector<200x32xf32>, vector<128x32xf32>, vector<200x128xf32> -> vector<200x128xf32>
    %c0_3 = arith.constant 0 : index
    %c0_4 = arith.constant 0 : index
    %3 = vector.load %arg5[%c0_3, %c0_4] : memref<200x1xf32, #tpu.memory_space<vmem>>, vector<200x1xf32>
    %4 = vector.broadcast %3 : vector<200x1xf32> to vector<200x128xf32>
    %5 = arith.addf %2, %4 : vector<200x128xf32>
    %6 = vector.extract_strided_slice %5 {offsets = [192, 0], sizes = [8, 128], strides = [1, 1]} : vector<200x128xf32> to vector<8x128xf32>
    %cst_5 = arith.constant dense<0xFF800000> : vector<128xf32>
    %7 = vector.multi_reduction <maximumf>, %6, %cst_5 [0] : vector<8x128xf32> to vector<128xf32>
    %8 = vector.shape_cast %7 : vector<128xf32> to vector<1x128xf32>
    %9 = vector.broadcast %8 : vector<1x128xf32> to vector<8x128xf32>
    %10 = arith.subf %6, %9 : vector<8x128xf32>
    %11 = math.exp %10 : vector<8x128xf32>
    %cst_6 = arith.constant dense<0.000000e+00> : vector<128xf32>
    %12 = vector.multi_reduction <add>, %11, %cst_6 [0] : vector<8x128xf32> to vector<128xf32>
    %13 = vector.shape_cast %12 : vector<128xf32> to vector<1x128xf32>
    %14 = math.log %13 : vector<1x128xf32>
    %15 = vector.broadcast %14 : vector<1x128xf32> to vector<8x128xf32>
    %16 = arith.subf %10, %15 : vector<8x128xf32>
    %17 = vector.extract_strided_slice %5 {offsets = [0, 0], sizes = [192, 128], strides = [1, 1]} : vector<200x128xf32> to vector<192x128xf32>
    %18 = vector.shape_cast %17 : vector<192x128xf32> to vector<8x3x8x128xf32>
    %cst_7 = arith.constant dense<0xFF800000> : vector<3x8x128xf32>
    %19 = vector.multi_reduction <maximumf>, %18, %cst_7 [0] : vector<8x3x8x128xf32> to vector<3x8x128xf32>
    %20 = vector.shape_cast %19 : vector<3x8x128xf32> to vector<1x3x8x128xf32>
    %21 = vector.broadcast %20 : vector<1x3x8x128xf32> to vector<8x3x8x128xf32>
    %22 = arith.subf %18, %21 : vector<8x3x8x128xf32>
    %23 = math.exp %22 : vector<8x3x8x128xf32>
    %cst_8 = arith.constant dense<0.000000e+00> : vector<3x8x128xf32>
    %24 = vector.multi_reduction <add>, %23, %cst_8 [0] : vector<8x3x8x128xf32> to vector<3x8x128xf32>
    %25 = vector.shape_cast %24 : vector<3x8x128xf32> to vector<1x3x8x128xf32>
    %26 = tpu.reciprocal %25 {approx = true} : vector<1x3x8x128xf32> -> vector<1x3x8x128xf32>
    %cst_9 = arith.constant 0.699999988 : f32
    %27 = vector.broadcast %cst_9 : f32 to vector<1x3x8x128xf32>
    %28 = arith.mulf %27, %26 : vector<1x3x8x128xf32>
    %c0_10 = arith.constant 0 : index
    %c0_11 = arith.constant 0 : index
    %c0_12 = arith.constant 0 : index
    %c0_13 = arith.constant 0 : index
    %29 = vector.load %arg6[%c0_10, %c0_11, %c0_12, %c0_13] : memref<8x1x8x1xf32, #tpu.memory_space<vmem>>, vector<8x1x8x1xf32>
    %30 = vector.broadcast %28 : vector<1x3x8x128xf32> to vector<8x3x8x128xf32>
    %31 = arith.mulf %23, %30 : vector<8x3x8x128xf32>
    %32 = vector.broadcast %29 : vector<8x1x8x1xf32> to vector<8x3x8x128xf32>
    %33 = arith.addf %32, %31 : vector<8x3x8x128xf32>
    %34 = math.log %33 : vector<8x3x8x128xf32>
    %35 = arith.truncf %34 : vector<8x3x8x128xf32> to vector<8x3x8x128xbf16>
    %c0_14 = arith.constant 0 : index
    %c0_15 = arith.constant 0 : index
    %c0_16 = arith.constant 0 : index
    %c0_17 = arith.constant 0 : index
    %36 = vector.load %arg7[%c0_14, %c0_15, %c0_16, %c0_17] : memref<8x3x8x128xbf16, #tpu.memory_space<vmem>>, vector<8x3x8x128xbf16>
    tpu.vector_store %arg7[%c0_14, %c0_15, %c0_16, %c0_17], %35 {strides = array<i32>} : memref<8x3x8x128xbf16, #tpu.memory_space<vmem>>, vector<8x3x8x128xbf16>,
    %c0_18 = arith.constant 0 : index
    %c0_19 = arith.constant 0 : index
    %c0_20 = arith.constant 0 : index
    %c0_21 = arith.constant 0 : index
    %37 = vector.load %arg2[%c0_18, %c0_19, %c0_20, %c0_21] : memref<8x3x1x128xf32, #tpu.memory_space<vmem>>, vector<8x3x1x128xf32>
    %38 = vector.broadcast %37 : vector<8x3x1x128xf32> to vector<8x3x8x128xf32>
    %39 = arith.mulf %33, %38 : vector<8x3x8x128xf32>
    %cst_22 = arith.constant dense<0.000000e+00> : vector<3x8x128xf32>
    %40 = vector.multi_reduction <add>, %39, %cst_22 [0] : vector<8x3x8x128xf32> to vector<3x8x128xf32>
    %41 = math.log %40 : vector<3x8x128xf32>
    %cst_23 = arith.constant dense<0.000000e+00> : vector<8x128xf32>
    %42 = vector.multi_reduction <add>, %41, %cst_23 [0] : vector<3x8x128xf32> to vector<8x128xf32>
    %43 = arith.addf %16, %42 : vector<8x128xf32>
    %cst_24 = arith.constant dense<0xFF800000> : vector<128xf32>
    %44 = vector.multi_reduction <maximumf>, %43, %cst_24 [0] : vector<8x128xf32> to vector<128xf32>
    %45 = vector.shape_cast %44 : vector<128xf32> to vector<1x128xf32>
    %46 = vector.broadcast %45 : vector<1x128xf32> to vector<8x128xf32>
    %47 = arith.subf %43, %46 : vector<8x128xf32>
    %48 = math.exp %47 : vector<8x128xf32>
    %cst_25 = arith.constant dense<0.000000e+00> : vector<128xf32>
    %49 = vector.multi_reduction <add>, %48, %cst_25 [0] : vector<8x128xf32> to vector<128xf32>
    %50 = vector.shape_cast %49 : vector<128xf32> to vector<1x128xf32>
    %51 = math.log %50 : vector<1x128xf32>
    %52 = arith.addf %51, %45 : vector<1x128xf32>
    %c0_26 = arith.constant 0 : index
    %c0_27 = arith.constant 0 : index
    %53 = vector.load %arg3[%c0_26, %c0_27] : memref<1x128xf32, #tpu.memory_space<vmem>>, vector<1x128xf32>
    %54 = arith.mulf %52, %53 : vector<1x128xf32>
    %c0_28 = arith.constant 0 : index
    %c0_29 = arith.constant 0 : index
    %55 = vector.load %arg8[%c0_28, %c0_29] : memref<1x128xf32, #tpu.memory_space<vmem>>, vector<1x128xf32>
    tpu.vector_store %arg8[%c0_28, %c0_29], %54 {strides = array<i32>} : memref<1x128xf32, #tpu.memory_space<vmem>>, vector<1x128xf32>,
    return
  }
  func.func @transform_0(%arg0: i32) -> (i32, i32) {
    %c0_i32 = arith.constant 0 : i32
    %c0_i32_0 = arith.constant 0 : i32
    return %arg0, %c0_i32 : i32, i32
  }
  func.func @transform_1(%arg0: i32) -> (i32, i32, i32, i32) {
    %c0_i32 = arith.constant 0 : i32
    %c0_i32_0 = arith.constant 0 : i32
    %c0_i32_1 = arith.constant 0 : i32
    %c0_i32_2 = arith.constant 0 : i32
    return %c0_i32, %c0_i32_0, %c0_i32_1, %arg0 : i32, i32, i32, i32
  }
  func.func @transform_2(%arg0: i32) -> (i32, i32) {
    %c0_i32 = arith.constant 0 : i32
    %c0_i32_0 = arith.constant 0 : i32
    return %c0_i32, %arg0 : i32, i32
  }
  func.func @transform_3(%arg0: i32) -> (i32, i32) {
    %c0_i32 = arith.constant 0 : i32
    %c0_i32_0 = arith.constant 0 : i32
    %c0_i32_1 = arith.constant 0 : i32
    return %c0_i32, %c0_i32_0 : i32, i32
  }
  func.func @transform_4(%arg0: i32) -> (i32, i32) {
    %c0_i32 = arith.constant 0 : i32
    %c0_i32_0 = arith.constant 0 : i32
    %c0_i32_1 = arith.constant 0 : i32
    return %c0_i32, %c0_i32_0 : i32, i32
  }
  func.func @transform_5(%arg0: i32) -> (i32, i32, i32, i32) {
    %c0_i32 = arith.constant 0 : i32
    %c0_i32_0 = arith.constant 0 : i32
    %c0_i32_1 = arith.constant 0 : i32
    %c0_i32_2 = arith.constant 0 : i32
    %c0_i32_3 = arith.constant 0 : i32
    return %c0_i32, %c0_i32_0, %c0_i32_1, %c0_i32_2 : i32, i32, i32, i32
  }
  func.func @transform_6(%arg0: i32) -> (i32, i32, i32, i32) {
    %c0_i32 = arith.constant 0 : i32
    %c0_i32_0 = arith.constant 0 : i32
    %c0_i32_1 = arith.constant 0 : i32
    %c0_i32_2 = arith.constant 0 : i32
    return %c0_i32, %c0_i32_0, %c0_i32_1, %arg0 : i32, i32, i32, i32
  }
  func.func @transform_7(%arg0: i32) -> (i32, i32) {
    %c0_i32 = arith.constant 0 : i32
    %c0_i32_0 = arith.constant 0 : i32
    return %c0_i32, %arg0 : i32, i32
  }
}

</mosaic_0001>

<llo_original>
// kernel: tpu_custom_call.1
$region0: #{tpu_custom_call.1}
  #allocation0 [shape = 'u32[]', space=smem, size = 0x4, offset = 0x4, fixed_abs, tag = 'smem constant byte address 0x4 - core index']
  #allocation1 [shape = 'u32[72,128]{1,0:T(1,128)}', space=vmem, size = 0x9000, scoped, tag = 'internal scratch']
  %s0 = inlined_call_operand.vmem [shape: f32[128,32], index: 0, kind: input, shape index: {}]
  %s1 = inlined_call_operand.vmem [shape: f32[8,3,1,128], index: 1, kind: input, shape index: {}]
  %s2 = inlined_call_operand.vmem [shape: f32[1,128], index: 2, kind: input, shape index: {}]
  %s3 = inlined_call_operand.vmem [shape: f32[200,32], index: 3, kind: input, shape index: {}]
  %s4 = inlined_call_operand.vmem [shape: f32[200,1], index: 4, kind: input, shape index: {}]
  %s5 = inlined_call_operand.vmem [shape: f32[8,1,8,1], index: 5, kind: input, shape index: {}]
  %s6 = inlined_call_operand.hbm [shape: bf16[8,3,8,128], index: 6, kind: output, shape index: {0}]
  %s7 = inlined_call_operand.hbm [shape: f32[1,128], index: 7, kind: output, shape index: {1}]
  %8 = xla_tuple %s6, %s7
  %s9 = sld [smem:[#allocation0]]
  $region42: #{tpu_custom_call.1} parent=0
    _
  %s11 = ssub.s32 1, %s9
  %s12 = scalar_select 0, %s11, %s9
  $region1: #{tpu_custom_call.1} parent=0
    #allocation2 [shape = 'u8[49152]{0}', space=vmem, size = 0xc000, scoped, tag = 'output window, operand 0, single buffered']
    #allocation3 [shape = 's32[1]{0}', space=sflag, size = 0x4, scoped, tag = 'scoped memory for tpu_custom_call.1']
    #allocation4 [shape = 'u8[512]{0}', space=vmem, size = 0x400, scoped, tag = 'output window, operand 1, single buffered']
    #allocation5 [shape = 's32[1]{0}', space=sflag, size = 0x4, scoped, tag = 'scoped memory for tpu_custom_call.1']
    %13 = vsyncpa [#allocation3], 0
    %14 = vsyncpa [#allocation5], 0
    // Predicated region
    $region2: #{tpu_custom_call.1} parent=1 // pred_check
      _
    $region3: #{tpu_custom_call.1} parent=1 // pred_check_branch
      %16 = sbr.rel (0) target = $region5
    $region4: #{tpu_custom_call.1} parent=1 // pred_region
      _
    $region5: #{tpu_custom_call.1} parent=1 // pred_fallthru
      _
    // Predicated region
    $region6: #{tpu_custom_call.1} parent=1 // pred_check
      _
    $region7: #{tpu_custom_call.1} parent=1 // pred_check_branch
      %18 = sbr.rel (0) target = $region9
    $region8: #{tpu_custom_call.1} parent=1 // pred_region
      _
    $region9: #{tpu_custom_call.1} parent=1 // pred_fallthru
      _
    // Predicated region
    $region10: #{tpu_custom_call.1} parent=1 // pred_check
      _
    $region11: #{tpu_custom_call.1} parent=1 // pred_check_branch
      %20 = sbr.rel (0) target = $region13
    $region12: #{tpu_custom_call.1} parent=1 // pred_region
      _
    $region13: #{tpu_custom_call.1} parent=1 // pred_fallthru
      _
    // Predicated region
    $region14: #{tpu_custom_call.1} parent=1 // pred_check
      _
    $region15: #{tpu_custom_call.1} parent=1 // pred_check_branch
      %22 = sbr.rel (0) target = $region17
    $region16: #{tpu_custom_call.1} parent=1 // pred_region
      _
    $region17: #{tpu_custom_call.1} parent=1 // pred_fallthru
      _
    // Predicated region
    $region18: #{tpu_custom_call.1} parent=1 // pred_check
      _
    $region19: #{tpu_custom_call.1} parent=1 // pred_check_branch
      %24 = sbr.rel (0) target = $region21
    $region20: #{tpu_custom_call.1} parent=1 // pred_region
      _
    $region21: #{tpu_custom_call.1} parent=1 // pred_fallthru
      _
    // Predicated region
    $region22: #{tpu_custom_call.1} parent=1 // pred_check
      _
    $region23: #{tpu_custom_call.1} parent=1 // pred_check_branch
      %26 = sbr.rel (0) target = $region25
    $region24: #{tpu_custom_call.1} parent=1 // pred_region
      _
    $region25: #{tpu_custom_call.1} parent=1 // pred_fallthru
      _
    %v27 = vld [vmem:[%s3] sm:$0xff]
    %v28 = vld [vmem:[%s3 + $0x8] sm:$0xff]
    %v29 = vld [vmem:[%s3 + $0x10] sm:$0xff]
    %v30 = vld [vmem:[%s3 + $0x18] sm:$0xff]
    %v31 = vld [vmem:[%s3 + $0x20] sm:$0xff]
    %v32 = vld [vmem:[%s3 + $0x28] sm:$0xff]
    %v33 = vld [vmem:[%s3 + $0x30] sm:$0xff]
    %v34 = vld [vmem:[%s3 + $0x38] sm:$0xff]
    %v35 = vld [vmem:[%s3 + $0x40] sm:$0xff]
    %v36 = vld [vmem:[%s3 + $0x48] sm:$0xff]
    %v37 = vld [vmem:[%s3 + $0x50] sm:$0xff]
    %v38 = vld [vmem:[%s3 + $0x58] sm:$0xff]
    %v39 = vld [vmem:[%s3 + $0x60] sm:$0xff]
    %v40 = vld [vmem:[%s3 + $0x68] sm:$0xff]
    %v41 = vld [vmem:[%s3 + $0x70] sm:$0xff]
    %v42 = vld [vmem:[%s3 + $0x78] sm:$0xff]
    %v43 = vld [vmem:[%s3 + $0x80] sm:$0xff]
    %v44 = vld [vmem:[%s3 + $0x88] sm:$0xff]
    %v45 = vld [vmem:[%s3 + $0x90] sm:$0xff]
    %v46 = vld [vmem:[%s3 + $0x98] sm:$0xff]
    %v47 = vld [vmem:[%s3 + $0xa0] sm:$0xff]
    %v48 = vld [vmem:[%s3 + $0xa8] sm:$0xff]
    %v49 = vld [vmem:[%s3 + $0xb0] sm:$0xff]
    %v50 = vld [vmem:[%s3 + $0xb8] sm:$0xff]
    %v51 = vld [vmem:[%s3 + $0xc0] sm:$0xff]
    %v52 = vld [vmem:[%s0] sm:$0xff]
    %v53 = vld [vmem:[%s0 + $0x8] sm:$0xff]
    %v54 = vld [vmem:[%s0 + $0x10] sm:$0xff]
    %v55 = vld [vmem:[%s0 + $0x18] sm:$0xff]
    %v56 = vld [vmem:[%s0 + $0x20] sm:$0xff]
    %v57 = vld [vmem:[%s0 + $0x28] sm:$0xff]
    %v58 = vld [vmem:[%s0 + $0x30] sm:$0xff]
    %v59 = vld [vmem:[%s0 + $0x38] sm:$0xff]
    %v60 = vld [vmem:[%s0 + $0x40] sm:$0xff]
    %v61 = vld [vmem:[%s0 + $0x48] sm:$0xff]
    %v62 = vld [vmem:[%s0 + $0x50] sm:$0xff]
    %v63 = vld [vmem:[%s0 + $0x58] sm:$0xff]
    %v64 = vld [vmem:[%s0 + $0x60] sm:$0xff]
    %v65 = vld [vmem:[%s0 + $0x68] sm:$0xff]
    %v66 = vld [vmem:[%s0 + $0x70] sm:$0xff]
    %v67 = vld [vmem:[%s0 + $0x78] sm:$0xff]
    %v68 = vld [vmem:[%s4] sm:$0xff]
    %v69 = vld [vmem:[%s4 + $0x8] sm:$0xff]
    %v70 = vld [vmem:[%s4 + $0x10] sm:$0xff]
    %v71 = vld [vmem:[%s4 + $0x18] sm:$0xff]
    %v72 = vld [vmem:[%s4 + $0x20] sm:$0xff]
    %v73 = vld [vmem:[%s4 + $0x28] sm:$0xff]
    %v74 = vld [vmem:[%s4 + $0x30] sm:$0xff]
    %v75 = vld [vmem:[%s4 + $0x38] sm:$0xff]
    %v76 = vld [vmem:[%s4 + $0x40] sm:$0xff]
    %v77 = vld [vmem:[%s4 + $0x48] sm:$0xff]
    %v78 = vld [vmem:[%s4 + $0x50] sm:$0xff]
    %v79 = vld [vmem:[%s4 + $0x58] sm:$0xff]
    %v80 = vld [vmem:[%s4 + $0x60] sm:$0xff]
    %v81 = vld [vmem:[%s4 + $0x68] sm:$0xff]
    %v82 = vld [vmem:[%s4 + $0x70] sm:$0xff]
    %v83 = vld [vmem:[%s4 + $0x78] sm:$0xff]
    %v84 = vld [vmem:[%s4 + $0x80] sm:$0xff]
    %v85 = vld [vmem:[%s4 + $0x88] sm:$0xff]
    %v86 = vld [vmem:[%s4 + $0x90] sm:$0xff]
    %v87 = vld [vmem:[%s4 + $0x98] sm:$0xff]
    %v88 = vld [vmem:[%s4 + $0xa0] sm:$0xff]
    %v89 = vld [vmem:[%s4 + $0xa8] sm:$0xff]
    %v90 = vld [vmem:[%s4 + $0xb0] sm:$0xff]
    %v91 = vld [vmem:[%s4 + $0xb8] sm:$0xff]
    %v92 = vld [vmem:[%s4 + $0xc0] sm:$0xff]
    %94 = vset.pattern.permute.xlu0 0
    %95 = vperm.xlu0 %94, %v68
    %v96 = vpop.permute.xlu0 %95
    %99 = vset.pattern.permute.xlu0 0
    %100 = vperm.xlu0 %99, %v69
    %v101 = vpop.permute.xlu0 %100
    %104 = vset.pattern.permute.xlu0 0
    %105 = vperm.xlu0 %104, %v70
    %v106 = vpop.permute.xlu0 %105
    %109 = vset.pattern.permute.xlu0 0
    %110 = vperm.xlu0 %109, %v71
    %v111 = vpop.permute.xlu0 %110
    %114 = vset.pattern.permute.xlu0 0
    %115 = vperm.xlu0 %114, %v72
    %v116 = vpop.permute.xlu0 %115
    %119 = vset.pattern.permute.xlu0 0
    %120 = vperm.xlu0 %119, %v73
    %v121 = vpop.permute.xlu0 %120
    %124 = vset.pattern.permute.xlu0 0
    %125 = vperm.xlu0 %124, %v74
    %v126 = vpop.permute.xlu0 %125
    %129 = vset.pattern.permute.xlu0 0
    %130 = vperm.xlu0 %129, %v75
    %v131 = vpop.permute.xlu0 %130
    %134 = vset.pattern.permute.xlu0 0
    %135 = vperm.xlu0 %134, %v76
    %v136 = vpop.permute.xlu0 %135
    %139 = vset.pattern.permute.xlu0 0
    %140 = vperm.xlu0 %139, %v77
    %v141 = vpop.permute.xlu0 %140
    %144 = vset.pattern.permute.xlu0 0
    %145 = vperm.xlu0 %144, %v78
    %v146 = vpop.permute.xlu0 %145
    %149 = vset.pattern.permute.xlu0 0
    %150 = vperm.xlu0 %149, %v79
    %v151 = vpop.permute.xlu0 %150
    %154 = vset.pattern.permute.xlu0 0
    %155 = vperm.xlu0 %154, %v80
    %v156 = vpop.permute.xlu0 %155
    %159 = vset.pattern.permute.xlu0 0
    %160 = vperm.xlu0 %159, %v81
    %v161 = vpop.permute.xlu0 %160
    %164 = vset.pattern.permute.xlu0 0
    %165 = vperm.xlu0 %164, %v82
    %v166 = vpop.permute.xlu0 %165
    %169 = vset.pattern.permute.xlu0 0
    %170 = vperm.xlu0 %169, %v83
    %v171 = vpop.permute.xlu0 %170
    %174 = vset.pattern.permute.xlu0 0
    %175 = vperm.xlu0 %174, %v84
    %v176 = vpop.permute.xlu0 %175
    %179 = vset.pattern.permute.xlu0 0
    %180 = vperm.xlu0 %179, %v85
    %v181 = vpop.permute.xlu0 %180
    %184 = vset.pattern.permute.xlu0 0
    %185 = vperm.xlu0 %184, %v86
    %v186 = vpop.permute.xlu0 %185
    %189 = vset.pattern.permute.xlu0 0
    %190 = vperm.xlu0 %189, %v87
    %v191 = vpop.permute.xlu0 %190
    %194 = vset.pattern.permute.xlu0 0
    %195 = vperm.xlu0 %194, %v88
    %v196 = vpop.permute.xlu0 %195
    %199 = vset.pattern.permute.xlu0 0
    %200 = vperm.xlu0 %199, %v89
    %v201 = vpop.permute.xlu0 %200
    %204 = vset.pattern.permute.xlu0 0
    %205 = vperm.xlu0 %204, %v90
    %v206 = vpop.permute.xlu0 %205
    %209 = vset.pattern.permute.xlu0 0
    %210 = vperm.xlu0 %209, %v91
    %v211 = vpop.permute.xlu0 %210
    %214 = vset.pattern.permute.xlu0 0
    %215 = vperm.xlu0 %214, %v92
    %v216 = vpop.permute.xlu0 %215
    %vm218 = vcmask 261120
    %v220 = vsel %vm218, %v27, 0
    %v223 = vsel %vm218, %v28, 0
    %v226 = vsel %vm218, %v29, 0
    %v229 = vsel %vm218, %v30, 0
    %v232 = vsel %vm218, %v31, 0
    %v235 = vsel %vm218, %v32, 0
    %v238 = vsel %vm218, %v33, 0
    %v241 = vsel %vm218, %v34, 0
    %v244 = vsel %vm218, %v35, 0
    %v247 = vsel %vm218, %v36, 0
    %v250 = vsel %vm218, %v37, 0
    %v253 = vsel %vm218, %v38, 0
    %v256 = vsel %vm218, %v39, 0
    %v259 = vsel %vm218, %v40, 0
    %v262 = vsel %vm218, %v41, 0
    %v265 = vsel %vm218, %v42, 0
    %v268 = vsel %vm218, %v43, 0
    %v271 = vsel %vm218, %v44, 0
    %v274 = vsel %vm218, %v45, 0
    %v277 = vsel %vm218, %v46, 0
    %v280 = vsel %vm218, %v47, 0
    %v283 = vsel %vm218, %v48, 0
    %v286 = vsel %vm218, %v49, 0
    %v289 = vsel %vm218, %v50, 0
    %v292 = vsel %vm218, %v51, 0
    %v295 = vsel %vm218, %v52, 0
    %v298 = vsel %vm218, %v53, 0
    %v301 = vsel %vm218, %v54, 0
    %v304 = vsel %vm218, %v55, 0
    %v307 = vsel %vm218, %v56, 0
    %v310 = vsel %vm218, %v57, 0
    %v313 = vsel %vm218, %v58, 0
    %v316 = vsel %vm218, %v59, 0
    %v319 = vsel %vm218, %v60, 0
    %v322 = vsel %vm218, %v61, 0
    %v325 = vsel %vm218, %v62, 0
    %v328 = vsel %vm218, %v63, 0
    %v331 = vsel %vm218, %v64, 0
    %v334 = vsel %vm218, %v65, 0
    %v337 = vsel %vm218, %v66, 0
    %v340 = vsel %vm218, %v67, 0
    %342 = vmatpush.xpose.msra.mxu0 %v340
    %343 = vmatpush.xpose.msra.mxu0 %v337
    %344 = vmatpush.xpose.msra.mxu0 %v334
    %345 = vmatpush.xpose.msra.mxu0 %v331
    %346 = vmatpush.xpose.msra.mxu0 %v328
    %347 = vmatpush.xpose.msra.mxu0 %v325
    %348 = vmatpush.xpose.msra.mxu0 %v322
    %349 = vmatpush.xpose.msra.mxu0 %v319
    %350 = vmatpush.xpose.msra.mxu0 %v316
    %351 = vmatpush.xpose.msra.mxu0 %v313
    %352 = vmatpush.xpose.msra.mxu0 %v310
    %353 = vmatpush.xpose.msra.mxu0 %v307
    %354 = vmatpush.xpose.msra.mxu0 %v304
    %355 = vmatpush.xpose.msra.mxu0 %v301
    %356 = vmatpush.xpose.msra.mxu0 %v298
    %357 = vmatpush.xpose.msra.mxu0 %v295
    %358 = vmatmul.f32.gmra.mxu0 %v220
    %v359 = vpop.f32.mrf.mxu0
    %v360 = vadd.f32 %v96, %v359
    %361 = vmatmul.f32.gmra.mxu0 %v223
    %v362 = vpop.f32.mrf.mxu0
    %v363 = vadd.f32 %v101, %v362
    %364 = vmatmul.f32.gmra.mxu0 %v226
    %v365 = vpop.f32.mrf.mxu0
    %v366 = vadd.f32 %v106, %v365
    %367 = vmatmul.f32.gmra.mxu0 %v229
    %v368 = vpop.f32.mrf.mxu0
    %v369 = vadd.f32 %v111, %v368
    %370 = vmatmul.f32.gmra.mxu0 %v232
    %v371 = vpop.f32.mrf.mxu0
    %v372 = vadd.f32 %v116, %v371
    %373 = vmatmul.f32.gmra.mxu0 %v235
    %v374 = vpop.f32.mrf.mxu0
    %v375 = vadd.f32 %v121, %v374
    %376 = vmatmul.f32.gmra.mxu0 %v238
    %v377 = vpop.f32.mrf.mxu0
    %v378 = vadd.f32 %v126, %v377
    %379 = vmatmul.f32.gmra.mxu0 %v241
    %v380 = vpop.f32.mrf.mxu0
    %v381 = vadd.f32 %v131, %v380
    %382 = vmatmul.f32.gmra.mxu0 %v244
    %v383 = vpop.f32.mrf.mxu0
    %v384 = vadd.f32 %v136, %v383
    %385 = vmatmul.f32.gmra.mxu0 %v247
    %v386 = vpop.f32.mrf.mxu0
    %v387 = vadd.f32 %v141, %v386
    %388 = vmatmul.f32.gmra.mxu0 %v250
    %v389 = vpop.f32.mrf.mxu0
    %v390 = vadd.f32 %v146, %v389
    %391 = vmatmul.f32.gmra.mxu0 %v253
    %v392 = vpop.f32.mrf.mxu0
    %v393 = vadd.f32 %v151, %v392
    %394 = vmatmul.f32.gmra.mxu0 %v256
    %v395 = vpop.f32.mrf.mxu0
    %v396 = vadd.f32 %v156, %v395
    %397 = vmatmul.f32.gmra.mxu0 %v259
    %v398 = vpop.f32.mrf.mxu0
    %v399 = vadd.f32 %v161, %v398
    %400 = vmatmul.f32.gmra.mxu0 %v262
    %v401 = vpop.f32.mrf.mxu0
    %v402 = vadd.f32 %v166, %v401
    %403 = vmatmul.f32.gmra.mxu0 %v265
    %v404 = vpop.f32.mrf.mxu0
    %v405 = vadd.f32 %v171, %v404
    %406 = vmatmul.f32.gmra.mxu0 %v268
    %v407 = vpop.f32.mrf.mxu0
    %v408 = vadd.f32 %v176, %v407
    %409 = vmatmul.f32.gmra.mxu0 %v271
    %v410 = vpop.f32.mrf.mxu0
    %v411 = vadd.f32 %v181, %v410
    %412 = vmatmul.f32.gmra.mxu0 %v274
    %v413 = vpop.f32.mrf.mxu0
    %v414 = vadd.f32 %v186, %v413
    %415 = vmatmul.f32.gmra.mxu0 %v277
    %v416 = vpop.f32.mrf.mxu0
    %v417 = vadd.f32 %v191, %v416
    %418 = vmatmul.f32.gmra.mxu0 %v280
    %v419 = vpop.f32.mrf.mxu0
    %v420 = vadd.f32 %v196, %v419
    %421 = vmatmul.f32.gmra.mxu0 %v283
    %v422 = vpop.f32.mrf.mxu0
    %v423 = vadd.f32 %v201, %v422
    %424 = vmatmul.f32.gmra.mxu0 %v286
    %v425 = vpop.f32.mrf.mxu0
    %v426 = vadd.f32 %v206, %v425
    %427 = vmatmul.f32.gmra.mxu0 %v289
    %v428 = vpop.f32.mrf.mxu0
    %v429 = vadd.f32 %v211, %v428
    %430 = vmatmul.f32.gmra.mxu0 %v292
    %v431 = vpop.f32.mrf.mxu0
    %v432 = vadd.f32 %v216, %v431
    %433 = vdwg.mxu0
    %v434 = vrot.slane %v432, 4
    %v435 = vmax.f32 %v432, %v434
    %v436 = vrot.slane %v435, 2
    %v437 = vmax.f32 %v435, %v436
    %v438 = vrot.slane %v437, 1
    %v439 = vmax.f32 %v437, %v438
    %v440 = vsub.f32 %v432, %v439
    %v441 = vmul.f32 %v440, 1.442695
    %v442 = vpow.pop %v441
    %v443 = vrot.slane %v442, 4
    %v444 = vadd.f32 %v442, %v443
    %v445 = vrot.slane %v444, 2
    %v446 = vadd.f32 %v444, %v445
    %v447 = vrot.slane %v446, 1
    %v448 = vadd.f32 %v446, %v447
    %v449 = vlog2.pop %v448
    %v450 = vmul.f32 %v449, 0.6931472
    %v451 = vsub.f32 %v440, %v450
    %v452 = vmax.f32 %v360, %v378
    %v453 = vmax.f32 %v369, %v387
    %v454 = vmax.f32 %v452, %v396
    %v455 = vmax.f32 %v453, %v405
    %v456 = vmax.f32 %v454, %v414
    %v457 = vmax.f32 %v455, %v423
    %v458 = vmax.f32 %v456, %v457
    %v459 = vmax.f32 %v363, %v381
    %v460 = vmax.f32 %v372, %v390
    %v461 = vmax.f32 %v459, %v399
    %v462 = vmax.f32 %v460, %v408
    %v463 = vmax.f32 %v461, %v417
    %v464 = vmax.f32 %v462, %v426
    %v465 = vmax.f32 %v463, %v464
    %v466 = vmax.f32 %v366, %v384
    %v467 = vmax.f32 %v375, %v393
    %v468 = vmax.f32 %v466, %v402
    %v469 = vmax.f32 %v467, %v411
    %v470 = vmax.f32 %v468, %v420
    %v471 = vmax.f32 %v469, %v429
    %v472 = vmax.f32 %v470, %v471
    %v473 = vsub.f32 %v360, %v458
    %v474 = vsub.f32 %v363, %v465
    %v475 = vsub.f32 %v366, %v472
    %v476 = vsub.f32 %v369, %v458
    %v477 = vsub.f32 %v372, %v465
    %v478 = vsub.f32 %v375, %v472
    %v479 = vsub.f32 %v378, %v458
    %v480 = vsub.f32 %v381, %v465
    %v481 = vsub.f32 %v384, %v472
    %v482 = vsub.f32 %v387, %v458
    %v483 = vsub.f32 %v390, %v465
    %v484 = vsub.f32 %v393, %v472
    %v485 = vsub.f32 %v396, %v458
    %v486 = vsub.f32 %v399, %v465
    %v487 = vsub.f32 %v402, %v472
    %v488 = vsub.f32 %v405, %v458
    %v489 = vsub.f32 %v408, %v465
    %v490 = vsub.f32 %v411, %v472
    %v491 = vsub.f32 %v414, %v458
    %v492 = vsub.f32 %v417, %v465
    %v493 = vsub.f32 %v420, %v472
    %v494 = vsub.f32 %v423, %v458
    %v495 = vsub.f32 %v426, %v465
    %v496 = vsub.f32 %v429, %v472
    %v497 = vmul.f32 %v473, 1.442695
    %v498 = vpow.pop %v497
    %v499 = vmul.f32 %v474, 1.442695
    %v500 = vpow.pop %v499
    %v501 = vmul.f32 %v475, 1.442695
    %v502 = vpow.pop %v501
    %v503 = vmul.f32 %v476, 1.442695
    %v504 = vpow.pop %v503
    %v505 = vmul.f32 %v477, 1.442695
    %v506 = vpow.pop %v505
    %v507 = vmul.f32 %v478, 1.442695
    %v508 = vpow.pop %v507
    %v509 = vmul.f32 %v479, 1.442695
    %v510 = vpow.pop %v509
    %v511 = vmul.f32 %v480, 1.442695
    %v512 = vpow.pop %v511
    %v513 = vmul.f32 %v481, 1.442695
    %v514 = vpow.pop %v513
    %v515 = vmul.f32 %v482, 1.442695
    %v516 = vpow.pop %v515
    %v517 = vmul.f32 %v483, 1.442695
    %v518 = vpow.pop %v517
    %v519 = vmul.f32 %v484, 1.442695
    %v520 = vpow.pop %v519
    %v521 = vmul.f32 %v485, 1.442695
    %v522 = vpow.pop %v521
    %v523 = vmul.f32 %v486, 1.442695
    %v524 = vpow.pop %v523
    %v525 = vmul.f32 %v487, 1.442695
    %v526 = vpow.pop %v525
    %v527 = vmul.f32 %v488, 1.442695
    %v528 = vpow.pop %v527
    %v529 = vmul.f32 %v489, 1.442695
    %v530 = vpow.pop %v529
    %v531 = vmul.f32 %v490, 1.442695
    %v532 = vpow.pop %v531
    %v533 = vmul.f32 %v491, 1.442695
    %v534 = vpow.pop %v533
    %v535 = vmul.f32 %v492, 1.442695
    %v536 = vpow.pop %v535
    %v537 = vmul.f32 %v493, 1.442695
    %v538 = vpow.pop %v537
    %v539 = vmul.f32 %v494, 1.442695
    %v540 = vpow.pop %v539
    %v541 = vmul.f32 %v495, 1.442695
    %v542 = vpow.pop %v541
    %v543 = vmul.f32 %v496, 1.442695
    %v544 = vpow.pop %v543
    %v545 = vadd.f32 %v498, %v504
    %v546 = vadd.f32 %v545, %v510
    %v547 = vadd.f32 %v546, %v516
    %v548 = vadd.f32 %v547, %v522
    %v549 = vadd.f32 %v548, %v528
    %v550 = vadd.f32 %v549, %v534
    %v551 = vadd.f32 %v550, %v540
    %v552 = vadd.f32 %v500, %v506
    %v553 = vadd.f32 %v552, %v512
    %v554 = vadd.f32 %v553, %v518
    %v555 = vadd.f32 %v554, %v524
    %v556 = vadd.f32 %v555, %v530
    %v557 = vadd.f32 %v556, %v536
    %v558 = vadd.f32 %v557, %v542
    %v559 = vadd.f32 %v502, %v508
    %v560 = vadd.f32 %v559, %v514
    %v561 = vadd.f32 %v560, %v520
    %v562 = vadd.f32 %v561, %v526
    %v563 = vadd.f32 %v562, %v532
    %v564 = vadd.f32 %v563, %v538
    %v565 = vadd.f32 %v564, %v544
    %v566 = vrcp.pop %v551
    %v567 = vrcp.pop %v558
    %v568 = vrcp.pop %v565
    %v569 = vmul.f32 %v566, 0.7
    %v570 = vmul.f32 %v567, 0.7
    %v571 = vmul.f32 %v568, 0.7
    %v572 = vld [vmem:[%s5] sm:$0xff]
    %v573 = vld [vmem:[%s5 + $0x8] sm:$0xff]
    %v574 = vld [vmem:[%s5 + $0x10] sm:$0xff]
    %v575 = vld [vmem:[%s5 + $0x18] sm:$0xff]
    %v576 = vld [vmem:[%s5 + $0x20] sm:$0xff]
    %v577 = vld [vmem:[%s5 + $0x28] sm:$0xff]
    %v578 = vld [vmem:[%s5 + $0x30] sm:$0xff]
    %v579 = vld [vmem:[%s5 + $0x38] sm:$0xff]
    %v580 = vmul.f32 %v498, %v569
    %v581 = vmul.f32 %v500, %v570
    %v582 = vmul.f32 %v502, %v571
    %v583 = vmul.f32 %v504, %v569
    %v584 = vmul.f32 %v506, %v570
    %v585 = vmul.f32 %v508, %v571
    %v586 = vmul.f32 %v510, %v569
    %v587 = vmul.f32 %v512, %v570
    %v588 = vmul.f32 %v514, %v571
    %v589 = vmul.f32 %v516, %v569
    %v590 = vmul.f32 %v518, %v570
    %v591 = vmul.f32 %v520, %v571
    %v592 = vmul.f32 %v522, %v569
    %v593 = vmul.f32 %v524, %v570
    %v594 = vmul.f32 %v526, %v571
    %v595 = vmul.f32 %v528, %v569
    %v596 = vmul.f32 %v530, %v570
    %v597 = vmul.f32 %v532, %v571
    %v598 = vmul.f32 %v534, %v569
    %v599 = vmul.f32 %v536, %v570
    %v600 = vmul.f32 %v538, %v571
    %v601 = vmul.f32 %v540, %v569
    %v602 = vmul.f32 %v542, %v570
    %v603 = vmul.f32 %v544, %v571
    %605 = vset.pattern.permute.xlu0 0
    %606 = vperm.xlu0 %605, %v572
    %v607 = vpop.permute.xlu0 %606
    %610 = vset.pattern.permute.xlu0 0
    %611 = vperm.xlu0 %610, %v573
    %v612 = vpop.permute.xlu0 %611
    %615 = vset.pattern.permute.xlu0 0
    %616 = vperm.xlu0 %615, %v574
    %v617 = vpop.permute.xlu0 %616
    %620 = vset.pattern.permute.xlu0 0
    %621 = vperm.xlu0 %620, %v575
    %v622 = vpop.permute.xlu0 %621
    %625 = vset.pattern.permute.xlu0 0
    %626 = vperm.xlu0 %625, %v576
    %v627 = vpop.permute.xlu0 %626
    %630 = vset.pattern.permute.xlu0 0
    %631 = vperm.xlu0 %630, %v577
    %v632 = vpop.permute.xlu0 %631
    %635 = vset.pattern.permute.xlu0 0
    %636 = vperm.xlu0 %635, %v578
    %v637 = vpop.permute.xlu0 %636
    %640 = vset.pattern.permute.xlu0 0
    %641 = vperm.xlu0 %640, %v579
    %v642 = vpop.permute.xlu0 %641
    %v644 = vadd.f32 %v607, %v580
    %v645 = vadd.f32 %v607, %v581
    %v646 = vadd.f32 %v607, %v582
    %v647 = vadd.f32 %v612, %v583
    %v648 = vadd.f32 %v612, %v584
    %v649 = vadd.f32 %v612, %v585
    %v650 = vadd.f32 %v617, %v586
    %v651 = vadd.f32 %v617, %v587
    %v652 = vadd.f32 %v617, %v588
    %v653 = vadd.f32 %v622, %v589
    %v654 = vadd.f32 %v622, %v590
    %v655 = vadd.f32 %v622, %v591
    %v656 = vadd.f32 %v627, %v592
    %v657 = vadd.f32 %v627, %v593
    %v658 = vadd.f32 %v627, %v594
    %v659 = vadd.f32 %v632, %v595
    %v660 = vadd.f32 %v632, %v596
    %v661 = vadd.f32 %v632, %v597
    %v662 = vadd.f32 %v637, %v598
    %v663 = vadd.f32 %v637, %v599
    %v664 = vadd.f32 %v637, %v600
    %v665 = vadd.f32 %v642, %v601
    %v666 = vadd.f32 %v642, %v602
    %v667 = vadd.f32 %v642, %v603
    %v668 = vlog2.pop %v644
    %v669 = vmul.f32 %v668, 0.6931472
    %v670 = vlog2.pop %v645
    %v671 = vmul.f32 %v670, 0.6931472
    %v672 = vlog2.pop %v646
    %v673 = vmul.f32 %v672, 0.6931472
    %v674 = vlog2.pop %v647
    %v675 = vmul.f32 %v674, 0.6931472
    %v676 = vlog2.pop %v648
    %v677 = vmul.f32 %v676, 0.6931472
    %v678 = vlog2.pop %v649
    %v679 = vmul.f32 %v678, 0.6931472
    %v680 = vlog2.pop %v650
    %v681 = vmul.f32 %v680, 0.6931472
    %v682 = vlog2.pop %v651
    %v683 = vmul.f32 %v682, 0.6931472
    %v684 = vlog2.pop %v652
    %v685 = vmul.f32 %v684, 0.6931472
    %v686 = vlog2.pop %v653
    %v687 = vmul.f32 %v686, 0.6931472
    %v688 = vlog2.pop %v654
    %v689 = vmul.f32 %v688, 0.6931472
    %v690 = vlog2.pop %v655
    %v691 = vmul.f32 %v690, 0.6931472
    %v692 = vlog2.pop %v656
    %v693 = vmul.f32 %v692, 0.6931472
    %v694 = vlog2.pop %v657
    %v695 = vmul.f32 %v694, 0.6931472
    %v696 = vlog2.pop %v658
    %v697 = vmul.f32 %v696, 0.6931472
    %v698 = vlog2.pop %v659
    %v699 = vmul.f32 %v698, 0.6931472
    %v700 = vlog2.pop %v660
    %v701 = vmul.f32 %v700, 0.6931472
    %v702 = vlog2.pop %v661
    %v703 = vmul.f32 %v702, 0.6931472
    %v704 = vlog2.pop %v662
    %v705 = vmul.f32 %v704, 0.6931472
    %v706 = vlog2.pop %v663
    %v707 = vmul.f32 %v706, 0.6931472
    %v708 = vlog2.pop %v664
    %v709 = vmul.f32 %v708, 0.6931472
    %v710 = vlog2.pop %v665
    %v711 = vmul.f32 %v710, 0.6931472
    %v712 = vlog2.pop %v666
    %v713 = vmul.f32 %v712, 0.6931472
    %v714 = vlog2.pop %v667
    %v715 = vmul.f32 %v714, 0.6931472
    %v716 = vpack.c.bf16 %v669, %v669
    %v717 = vpack.c.bf16 %v671, %v671
    %v718 = vpack.c.bf16 %v673, %v673
    %v719 = vpack.c.bf16 %v675, %v675
    %v720 = vpack.c.bf16 %v677, %v677
    %v721 = vpack.c.bf16 %v679, %v679
    %v722 = vpack.c.bf16 %v681, %v681
    %v723 = vpack.c.bf16 %v683, %v683
    %v724 = vpack.c.bf16 %v685, %v685
    %v725 = vpack.c.bf16 %v687, %v687
    %v726 = vpack.c.bf16 %v689, %v689
    %v727 = vpack.c.bf16 %v691, %v691
    %v728 = vpack.c.bf16 %v693, %v693
    %v729 = vpack.c.bf16 %v695, %v695
    %v730 = vpack.c.bf16 %v697, %v697
    %v731 = vpack.c.bf16 %v699, %v699
    %v732 = vpack.c.bf16 %v701, %v701
    %v733 = vpack.c.bf16 %v703, %v703
    %v734 = vpack.c.bf16 %v705, %v705
    %v735 = vpack.c.bf16 %v707, %v707
    %v736 = vpack.c.bf16 %v709, %v709
    %v737 = vpack.c.bf16 %v711, %v711
    %v738 = vpack.c.bf16 %v713, %v713
    %v739 = vpack.c.bf16 %v715, %v715
    %740 = vst [vmem:[#allocation2] sm:$0xf] %v716
    %741 = vst [vmem:[#allocation2 + $0x4] sm:$0xf] %v717
    %742 = vst [vmem:[#allocation2 + $0x8] sm:$0xf] %v718
    %743 = vst [vmem:[#allocation2 + $0xc] sm:$0xf] %v719
    %744 = vst [vmem:[#allocation2 + $0x10] sm:$0xf] %v720
    %745 = vst [vmem:[#allocation2 + $0x14] sm:$0xf] %v721
    %746 = vst [vmem:[#allocation2 + $0x18] sm:$0xf] %v722
    %747 = vst [vmem:[#allocation2 + $0x1c] sm:$0xf] %v723
    %748 = vst [vmem:[#allocation2 + $0x20] sm:$0xf] %v724
    %749 = vst [vmem:[#allocation2 + $0x24] sm:$0xf] %v725
    %750 = vst [vmem:[#allocation2 + $0x28] sm:$0xf] %v726
    %751 = vst [vmem:[#allocation2 + $0x2c] sm:$0xf] %v727
    %752 = vst [vmem:[#allocation2 + $0x30] sm:$0xf] %v728
    %753 = vst [vmem:[#allocation2 + $0x34] sm:$0xf] %v729
    %754 = vst [vmem:[#allocation2 + $0x38] sm:$0xf] %v730
    %755 = vst [vmem:[#allocation2 + $0x3c] sm:$0xf] %v731
    %756 = vst [vmem:[#allocation2 + $0x40] sm:$0xf] %v732
    %757 = vst [vmem:[#allocation2 + $0x44] sm:$0xf] %v733
    %758 = vst [vmem:[#allocation2 + $0x48] sm:$0xf] %v734
    %759 = vst [vmem:[#allocation2 + $0x4c] sm:$0xf] %v735
    %760 = vst [vmem:[#allocation2 + $0x50] sm:$0xf] %v736
    %761 = vst [vmem:[#allocation2 + $0x54] sm:$0xf] %v737
    %762 = vst [vmem:[#allocation2 + $0x58] sm:$0xf] %v738
    %763 = vst [vmem:[#allocation2 + $0x5c] sm:$0xf] %v739
    %v764 = vld [vmem:[%s1] sm:$0x1]
    %v765 = vld [vmem:[%s1 + $0x1] sm:$0x1]
    %v766 = vld [vmem:[%s1 + $0x2] sm:$0x1]
    %v767 = vld [vmem:[%s1 + $0x3] sm:$0x1]
    %v768 = vld [vmem:[%s1 + $0x4] sm:$0x1]
    %v769 = vld [vmem:[%s1 + $0x5] sm:$0x1]
    %v770 = vld [vmem:[%s1 + $0x6] sm:$0x1]
    %v771 = vld [vmem:[%s1 + $0x7] sm:$0x1]
    %v772 = vld [vmem:[%s1 + $0x8] sm:$0x1]
    %v773 = vld [vmem:[%s1 + $0x9] sm:$0x1]
    %v774 = vld [vmem:[%s1 + $0xa] sm:$0x1]
    %v775 = vld [vmem:[%s1 + $0xb] sm:$0x1]
    %v776 = vld [vmem:[%s1 + $0xc] sm:$0x1]
    %v777 = vld [vmem:[%s1 + $0xd] sm:$0x1]
    %v778 = vld [vmem:[%s1 + $0xe] sm:$0x1]
    %v779 = vld [vmem:[%s1 + $0xf] sm:$0x1]
    %v780 = vld [vmem:[%s1 + $0x10] sm:$0x1]
    %v781 = vld [vmem:[%s1 + $0x11] sm:$0x1]
    %v782 = vld [vmem:[%s1 + $0x12] sm:$0x1]
    %v783 = vld [vmem:[%s1 + $0x13] sm:$0x1]
    %v784 = vld [vmem:[%s1 + $0x14] sm:$0x1]
    %v785 = vld [vmem:[%s1 + $0x15] sm:$0x1]
    %v786 = vld [vmem:[%s1 + $0x16] sm:$0x1]
    %v787 = vld [vmem:[%s1 + $0x17] sm:$0x1]
    %v812 = vperm.slane %v764, 0
    %v813 = vperm.slane %v765, 0
    %v814 = vperm.slane %v766, 0
    %v815 = vperm.slane %v767, 0
    %v816 = vperm.slane %v768, 0
    %v817 = vperm.slane %v769, 0
    %v818 = vperm.slane %v770, 0
    %v819 = vperm.slane %v771, 0
    %v820 = vperm.slane %v772, 0
    %v821 = vperm.slane %v773, 0
    %v822 = vperm.slane %v774, 0
    %v823 = vperm.slane %v775, 0
    %v824 = vperm.slane %v776, 0
    %v825 = vperm.slane %v777, 0
    %v826 = vperm.slane %v778, 0
    %v827 = vperm.slane %v779, 0
    %v828 = vperm.slane %v780, 0
    %v829 = vperm.slane %v781, 0
    %v830 = vperm.slane %v782, 0
    %v831 = vperm.slane %v783, 0
    %v832 = vperm.slane %v784, 0
    %v833 = vperm.slane %v785, 0
    %v834 = vperm.slane %v786, 0
    %v835 = vperm.slane %v787, 0
    %v860 = vmul.f32 %v644, %v812
    %v861 = vmul.f32 %v645, %v813
    %v862 = vmul.f32 %v646, %v814
    %v863 = vmul.f32 %v647, %v815
    %v864 = vmul.f32 %v648, %v816
    %v865 = vmul.f32 %v649, %v817
    %v866 = vmul.f32 %v650, %v818
    %v867 = vmul.f32 %v651, %v819
    %v868 = vmul.f32 %v652, %v820
    %v869 = vmul.f32 %v653, %v821
    %v870 = vmul.f32 %v654, %v822
    %v871 = vmul.f32 %v655, %v823
    %v872 = vmul.f32 %v656, %v824
    %v873 = vmul.f32 %v657, %v825
    %v874 = vmul.f32 %v658, %v826
    %v875 = vmul.f32 %v659, %v827
    %v876 = vmul.f32 %v660, %v828
    %v877 = vmul.f32 %v661, %v829
    %v878 = vmul.f32 %v662, %v830
    %v879 = vmul.f32 %v663, %v831
    %v880 = vmul.f32 %v664, %v832
    %v881 = vmul.f32 %v665, %v833
    %v882 = vmul.f32 %v666, %v834
    %v883 = vmul.f32 %v667, %v835
    %v884 = vadd.f32 %v860, %v863
    %v885 = vadd.f32 %v884, %v866
    %v886 = vadd.f32 %v885, %v869
    %v887 = vadd.f32 %v886, %v872
    %v888 = vadd.f32 %v887, %v875
    %v889 = vadd.f32 %v888, %v878
    %v890 = vadd.f32 %v889, %v881
    %v891 = vadd.f32 %v861, %v864
    %v892 = vadd.f32 %v891, %v867
    %v893 = vadd.f32 %v892, %v870
    %v894 = vadd.f32 %v893, %v873
    %v895 = vadd.f32 %v894, %v876
    %v896 = vadd.f32 %v895, %v879
    %v897 = vadd.f32 %v896, %v882
    %v898 = vadd.f32 %v862, %v865
    %v899 = vadd.f32 %v898, %v868
    %v900 = vadd.f32 %v899, %v871
    %v901 = vadd.f32 %v900, %v874
    %v902 = vadd.f32 %v901, %v877
    %v903 = vadd.f32 %v902, %v880
    %v904 = vadd.f32 %v903, %v883
    %v905 = vlog2.pop %v890
    %v906 = vmul.f32 %v905, 0.6931472
    %v907 = vlog2.pop %v897
    %v908 = vmul.f32 %v907, 0.6931472
    %v909 = vlog2.pop %v904
    %v910 = vmul.f32 %v909, 0.6931472
    %v911 = vadd.f32 %v906, %v908
    %v912 = vadd.f32 %v911, %v910
    %v913 = vadd.f32 %v451, %v912
    %v914 = vrot.slane %v913, 4
    %v915 = vmax.f32 %v913, %v914
    %v916 = vrot.slane %v915, 2
    %v917 = vmax.f32 %v915, %v916
    %v918 = vrot.slane %v917, 1
    %v919 = vmax.f32 %v917, %v918
    %v920 = vsub.f32 %v913, %v919
    %v921 = vmul.f32 %v920, 1.442695
    %v922 = vpow.pop %v921
    %v923 = vrot.slane %v922, 4
    %v924 = vadd.f32 %v922, %v923
    %v925 = vrot.slane %v924, 2
    %v926 = vadd.f32 %v924, %v925
    %v927 = vrot.slane %v926, 1
    %v928 = vadd.f32 %v926, %v927
    %v929 = vlog2.pop %v928
    %v930 = vmul.f32 %v929, 0.6931472
    %v931 = vadd.f32 %v930, %v919
    %v932 = vld [vmem:[%s2] sm:$0x1]
    %v933 = vmul.f32 %v931, %v932
    %934 = vst [vmem:[#allocation4] sm:$0x1] %v933
    // Predicated region
    $region26: #{tpu_custom_call.1} parent=1 // pred_check
      _
    $region27: #{tpu_custom_call.1} parent=1 // pred_check_branch
      %936 = sbr.rel (0) target = $region29
    $region28: #{tpu_custom_call.1} parent=1 // pred_region
      %938 = vsyncadd [#allocation3], 0
      %s939 = sshll.u32 [#allocation2], 4
      %s940 = int_to_ptr.vmem [resolvable:$true] %s939
      %s941 = sshll.u32 %s6, 4
      %s942 = int_to_ptr.hbm [resolvable:$true] %s941
      %947 = dma.vmem_to_hbm [thread:$0]  %s940, 1536, %s942, [#allocation3], 64, 64, 4
    $region29: #{tpu_custom_call.1} parent=1 // pred_fallthru
      _
    // Predicated region
    $region30: #{tpu_custom_call.1} parent=1 // pred_check
      _
    $region31: #{tpu_custom_call.1} parent=1 // pred_check_branch
      %949 = sbr.rel (0) target = $region33
    $region32: #{tpu_custom_call.1} parent=1 // pred_region
      %951 = vsyncadd [#allocation5], 0
      %s953 = sshll.u32 [#allocation4], 4
      %s954 = int_to_ptr.vmem [resolvable:$true] %s953
      %s955 = sshll.u32 %s7, 4
      %s956 = int_to_ptr.hbm [resolvable:$true] %s955
      %958 = dma.vmem_to_hbm [thread:$0]  %s954, 16, %s956, [#allocation5]
    $region33: #{tpu_custom_call.1} parent=1 // pred_fallthru
      _
    // Predicated region
    $region34: #{tpu_custom_call.1} parent=1 // pred_check
      _
    $region35: #{tpu_custom_call.1} parent=1 // pred_check_branch
      %960 = sbr.rel (0) target = $region37
    $region36: #{tpu_custom_call.1} parent=1 // pred_region
      %962 = dma.done [#allocation3], 1536
    $region37: #{tpu_custom_call.1} parent=1 // pred_fallthru
      _
    // Predicated region
    $region38: #{tpu_custom_call.1} parent=1 // pred_check
      _
    $region39: #{tpu_custom_call.1} parent=1 // pred_check_branch
      %964 = sbr.rel (0) target = $region41
    $region40: #{tpu_custom_call.1} parent=1 // pred_region
      %966 = dma.done [#allocation5], 16
    $region41: #{tpu_custom_call.1} parent=1 // pred_fallthru
      _
    %967 = vsyncpa [#allocation3], 1
    %968 = vsyncpa [#allocation5], 1

</llo_original>
